<compile_context>
chip_gen: v7x
topology: tpu7x:2x2x1
jax: 0.10.0
libtpu: 0.0.40
codegen_flags: <defaults>
</compile_context>

<pallas_src>
import functools

import jax
import jax.numpy as jnp
from jax import lax
from jax.experimental import pallas as pl
from jax.experimental.pallas import tpu as pltpu

NUM_CLASSES = 10   # stands in for len(label_dict_from_config_file(...)); yaml not available
BN_EPS = 1e-5
IN_FEATURES = 63
IN_PAD = 64        # 63 -> 64 (zero-padded feature column)
HIDDEN = 128
OUT_PAD = 128      # 10 -> 128 (zero-padded output lanes, lane-dense store)
BATCH_TILE = 8     # rows per grid step; grow to 128/256 for serving workloads


def mlp_kernel(x_ref, w1_ref, w234_ref, w5_ref, bias_ref, out_ref):
    """One batch tile of the whole MLP. All weights are VMEM-resident slabs."""
    # Linear(63->128) + ReLU   (feature dim pre-padded 63->64 with zeros)
    h = jnp.dot(x_ref[...], w1_ref[...], preferred_element_type=jnp.float32)
    h = jnp.maximum(h + bias_ref[0:1, :], 0.0)

    # BatchNorm1d(128) was folded into this layer's weights/bias host-side.
    # Linear(128->128) + ReLU   (Dropout p=0.4 -> identity at inference)
    h = jnp.dot(h, w234_ref[0], preferred_element_type=jnp.float32)
    h = jnp.maximum(h + bias_ref[1:2, :], 0.0)

    # Linear(128->128) + ReLU   (Dropout p=0.4 -> identity at inference)
    h = jnp.dot(h, w234_ref[1], preferred_element_type=jnp.float32)
    h = jnp.maximum(h + bias_ref[2:3, :], 0.0)

    # Linear(128->128) + ReLU   (Dropout p=0.6 -> identity at inference)
    h = jnp.dot(h, w234_ref[2], preferred_element_type=jnp.float32)
    h = jnp.maximum(h + bias_ref[3:4, :], 0.0)

    # Linear(128->NUM_CLASSES), output lanes zero-padded to 128.
    logits = jnp.dot(h, w5_ref[...], preferred_element_type=jnp.float32) + bias_ref[4:5, :]
    out_ref[...] = logits.astype(out_ref.dtype)


def init_params(key):
    """Deterministic 'PyTorch-like' parameters (weights stored as (in, out))."""
    ks = jax.random.split(key, 14)

    def lin(kw, kb, fan_in, fan_out):
        bound = 1.0 / jnp.sqrt(jnp.float32(fan_in))
        w = jax.random.uniform(kw, (fan_in, fan_out), jnp.float32, -bound, bound)
        b = jax.random.uniform(kb, (1, fan_out), jnp.float32, -bound, bound)
        return w, b

    w1, b1 = lin(ks[0], ks[1], IN_FEATURES, HIDDEN)
    w2, b2 = lin(ks[2], ks[3], HIDDEN, HIDDEN)
    w3, b3 = lin(ks[4], ks[5], HIDDEN, HIDDEN)
    w4, b4 = lin(ks[6], ks[7], HIDDEN, HIDDEN)
    w5, b5 = lin(ks[8], ks[9], HIDDEN, NUM_CLASSES)

    # Non-trivial eval-mode BN statistics so the folding is actually exercised.
    gamma = jax.random.uniform(ks[10], (1, HIDDEN), jnp.float32, 0.5, 1.5)
    beta = jax.random.uniform(ks[11], (1, HIDDEN), jnp.float32, -0.5, 0.5)
    rmean = jax.random.uniform(ks[12], (1, HIDDEN), jnp.float32, -0.5, 0.5)
    rvar = jax.random.uniform(ks[13], (1, HIDDEN), jnp.float32, 0.5, 1.5)

    return dict(w1=w1, b1=b1, w2=w2, b2=b2, w3=w3, b3=b3, w4=w4, b4=b4,
                w5=w5, b5=b5, gamma=gamma, beta=beta, rmean=rmean, rvar=rvar)


def pack_params(p):
    """Host-side prep: fold BN into layer 2, pad to aligned shapes, slab-pack."""
    # BN(h) = h*scale + shift, then Linear2:  (h*scale + shift) @ W2 + b2
    #       = h @ (diag(scale) @ W2) + (shift @ W2 + b2)
    scale = p["gamma"] * lax.rsqrt(p["rvar"] + BN_EPS)          # (1, 128)
    shift = p["beta"] - p["rmean"] * scale                      # (1, 128)
    w2f = p["w2"] * scale.reshape(HIDDEN, 1)                    # scale input rows
    b2f = p["b2"] + shift @ p["w2"]

    w1p = jnp.zeros((IN_PAD, HIDDEN), jnp.float32).at[:IN_FEATURES].set(p["w1"])
    w5p = jnp.zeros((HIDDEN, OUT_PAD), jnp.float32).at[:, :NUM_CLASSES].set(p["w5"])
    b5p = jnp.zeros((1, OUT_PAD), jnp.float32).at[:, :NUM_CLASSES].set(p["b5"])

    w234 = jnp.stack([w2f, p["w3"], p["w4"]], axis=0)           # (3, 128, 128)

    biases = jnp.zeros((8, HIDDEN), jnp.float32)                # sublane-padded slab
    biases = (biases.at[0].set(p["b1"][0])
                    .at[1].set(b2f[0])
                    .at[2].set(p["b3"][0])
                    .at[3].set(p["b4"][0])
                    .at[4].set(b5p[0]))
    return w1p, w234, w5p, biases


@functools.partial(jax.jit, static_argnames=("batch_tile",))
def neural_network_forward(x, w1p, w234, w5p, biases, *, batch_tile=BATCH_TILE):
    batch = x.shape[0]
    b_pad = pl.cdiv(batch, batch_tile) * batch_tile
    # Pad batch to a tile multiple and features 63 -> 64 (zeros are bit-exact).
    x_pad = jnp.zeros((b_pad, IN_PAD), jnp.float32).at[:batch, :IN_FEATURES].set(x)

    out = pl.pallas_call(
        mlp_kernel,
        out_shape=jax.ShapeDtypeStruct((b_pad, OUT_PAD), jnp.float32),
        grid=(b_pad // batch_tile,),
        in_specs=[
            pl.BlockSpec((batch_tile, IN_PAD), lambda i: (i, 0)),      # x tile
            pl.BlockSpec((IN_PAD, HIDDEN), lambda i: (0, 0)),          # w1 (resident)
            pl.BlockSpec((3, HIDDEN, HIDDEN), lambda i: (0, 0, 0)),    # w2/w3/w4 slab
            pl.BlockSpec((HIDDEN, OUT_PAD), lambda i: (0, 0)),         # w5 (padded)
            pl.BlockSpec((8, HIDDEN), lambda i: (0, 0)),               # bias slab
        ],
        out_specs=pl.BlockSpec((batch_tile, OUT_PAD), lambda i: (i, 0)),
        compiler_params=pltpu.CompilerParams(
            dimension_semantics=("parallel",)),  # megacore split on v7x
    )(x_pad, w1p, w234, w5p, biases)

    return out[:batch, :NUM_CLASSES]


def reference_forward(x, p):
    """Pure-JAX reference with the ORIGINAL (unfolded, unpadded) parameters."""
    h = jnp.maximum(x @ p["w1"] + p["b1"], 0.0)
    h = (h - p["rmean"]) / jnp.sqrt(p["rvar"] + BN_EPS) * p["gamma"] + p["beta"]
    h = jnp.maximum(h @ p["w2"] + p["b2"], 0.0)
    h = jnp.maximum(h @ p["w3"] + p["b3"], 0.0)
    h = jnp.maximum(h @ p["w4"] + p["b4"], 0.0)
    return h @ p["w5"] + p["b5"]


if __name__ == "__main__":
    key = jax.random.PRNGKey(0)
    kx, kp = jax.random.split(key)

    batch = 19  # intentionally not a multiple of BATCH_TILE; wrapper pads/slices
    x = jax.random.normal(kx, (batch, IN_FEATURES), jnp.float32)

    params = init_params(kp)
    packed = pack_params(params)

    logits = neural_network_forward(x, *packed)
    logits = jax.block_until_ready(logits)

    ref = reference_forward(x, params)
    assert logits.shape == (batch, NUM_CLASSES)
    assert jnp.allclose(logits, ref, atol=1e-4, rtol=1e-4), \
        float(jnp.max(jnp.abs(logits - ref)))

    print("KERNEL_OK")
</pallas_src>

<mosaic_0001>
module attributes {stable_mosaic.version = 11 : i64} {
  func.func @mlp_kernel(%arg0: i32, %arg1: memref<8x64xf32, #tpu.memory_space<vmem>>, %arg2: memref<64x128xf32, #tpu.memory_space<vmem>>, %arg3: memref<3x128x128xf32, #tpu.memory_space<vmem>>, %arg4: memref<128x128xf32, #tpu.memory_space<vmem>>, %arg5: memref<8x128xf32, #tpu.memory_space<vmem>>, %arg6: memref<8x128xf32, #tpu.memory_space<vmem>>) attributes {dimension_semantics = [#tpu.dimension_semantics<parallel>], iteration_bounds = array<i64: 3>, scalar_prefetch = 0 : i64, scratch_operands = 0 : i64, tpu.core_type = #tpu.core_type<tc>, window_params = [{transform_indices = @transform_0, window_bounds = array<i64: 8, 64>}, {pipeline_mode = #tpu.pipeline_mode<synchronous>, transform_indices = @transform_1, window_bounds = array<i64: 64, 128>}, {pipeline_mode = #tpu.pipeline_mode<synchronous>, transform_indices = @transform_2, window_bounds = array<i64: 3, 128, 128>}, {pipeline_mode = #tpu.pipeline_mode<synchronous>, transform_indices = @transform_3, window_bounds = array<i64: 128, 128>}, {pipeline_mode = #tpu.pipeline_mode<synchronous>, transform_indices = @transform_4, window_bounds = array<i64: 8, 128>}, {transform_indices = @transform_5, window_bounds = array<i64: 8, 128>}]} {
    %c0 = arith.constant 0 : index
    %c0_0 = arith.constant 0 : index
    %0 = vector.load %arg1[%c0, %c0_0] : memref<8x64xf32, #tpu.memory_space<vmem>>, vector<8x64xf32>
    %c0_1 = arith.constant 0 : index
    %c0_2 = arith.constant 0 : index
    %1 = vector.load %arg2[%c0_1, %c0_2] : memref<64x128xf32, #tpu.memory_space<vmem>>, vector<64x128xf32>
    %cst = arith.constant dense<0.000000e+00> : vector<8x128xf32>
    %2 = tpu.matmul %0, %1, %cst {dimension_numbers = #tpu.dot_dimension_numbers<[1], [0], [0], [1], [0, 0, 1, 1], [], []>} : vector<8x64xf32>, vector<64x128xf32>, vector<8x128xf32> -> vector<8x128xf32>
    %c0_3 = arith.constant 0 : index
    %c0_4 = arith.constant 0 : index
    %3 = vector.load %arg5[%c0_3, %c0_4] : memref<8x128xf32, #tpu.memory_space<vmem>>, vector<1x128xf32>
    %4 = vector.broadcast %3 : vector<1x128xf32> to vector<8x128xf32>
    %5 = arith.addf %2, %4 : vector<8x128xf32>
    %cst_5 = arith.constant 0.000000e+00 : f32
    %6 = vector.broadcast %cst_5 : f32 to vector<8x128xf32>
    %7 = arith.maximumf %5, %6 : vector<8x128xf32>
    %c0_6 = arith.constant 0 : index
    %c0_7 = arith.constant 0 : index
    %c0_8 = arith.constant 0 : index
    %8 = vector.load %arg3[%c0_6, %c0_7, %c0_8] : memref<3x128x128xf32, #tpu.memory_space<vmem>>, vector<1x128x128xf32>
    %9 = vector.shape_cast %8 : vector<1x128x128xf32> to vector<128x128xf32>
    %cst_9 = arith.constant dense<0.000000e+00> : vector<8x128xf32>
    %10 = tpu.matmul %7, %9, %cst_9 {dimension_numbers = #tpu.dot_dimension_numbers<[1], [0], [0], [1], [0, 0, 1, 1], [], []>} : vector<8x128xf32>, vector<128x128xf32>, vector<8x128xf32> -> vector<8x128xf32>
    %c1 = arith.constant 1 : index
    %c0_10 = arith.constant 0 : index
    %11 = vector.load %arg5[%c1, %c0_10] : memref<8x128xf32, #tpu.memory_space<vmem>>, vector<1x128xf32>
    %12 = vector.broadcast %11 : vector<1x128xf32> to vector<8x128xf32>
    %13 = arith.addf %10, %12 : vector<8x128xf32>
    %cst_11 = arith.constant 0.000000e+00 : f32
    %14 = vector.broadcast %cst_11 : f32 to vector<8x128xf32>
    %15 = arith.maximumf %13, %14 : vector<8x128xf32>
    %c1_12 = arith.constant 1 : index
    %c0_13 = arith.constant 0 : index
    %c0_14 = arith.constant 0 : index
    %16 = vector.load %arg3[%c1_12, %c0_13, %c0_14] : memref<3x128x128xf32, #tpu.memory_space<vmem>>, vector<1x128x128xf32>
    %17 = vector.shape_cast %16 : vector<1x128x128xf32> to vector<128x128xf32>
    %cst_15 = arith.constant dense<0.000000e+00> : vector<8x128xf32>
    %18 = tpu.matmul %15, %17, %cst_15 {dimension_numbers = #tpu.dot_dimension_numbers<[1], [0], [0], [1], [0, 0, 1, 1], [], []>} : vector<8x128xf32>, vector<128x128xf32>, vector<8x128xf32> -> vector<8x128xf32>
    %c2 = arith.constant 2 : index
    %c0_16 = arith.constant 0 : index
    %19 = vector.load %arg5[%c2, %c0_16] : memref<8x128xf32, #tpu.memory_space<vmem>>, vector<1x128xf32>
    %20 = vector.broadcast %19 : vector<1x128xf32> to vector<8x128xf32>
    %21 = arith.addf %18, %20 : vector<8x128xf32>
    %cst_17 = arith.constant 0.000000e+00 : f32
    %22 = vector.broadcast %cst_17 : f32 to vector<8x128xf32>
    %23 = arith.maximumf %21, %22 : vector<8x128xf32>
    %c2_18 = arith.constant 2 : index
    %c0_19 = arith.constant 0 : index
    %c0_20 = arith.constant 0 : index
    %24 = vector.load %arg3[%c2_18, %c0_19, %c0_20] : memref<3x128x128xf32, #tpu.memory_space<vmem>>, vector<1x128x128xf32>
    %25 = vector.shape_cast %24 : vector<1x128x128xf32> to vector<128x128xf32>
    %cst_21 = arith.constant dense<0.000000e+00> : vector<8x128xf32>
    %26 = tpu.matmul %23, %25, %cst_21 {dimension_numbers = #tpu.dot_dimension_numbers<[1], [0], [0], [1], [0, 0, 1, 1], [], []>} : vector<8x128xf32>, vector<128x128xf32>, vector<8x128xf32> -> vector<8x128xf32>
    %c3 = arith.constant 3 : index
    %c0_22 = arith.constant 0 : index
    %27 = vector.load %arg5[%c3, %c0_22] : memref<8x128xf32, #tpu.memory_space<vmem>>, vector<1x128xf32>
    %28 = vector.broadcast %27 : vector<1x128xf32> to vector<8x128xf32>
    %29 = arith.addf %26, %28 : vector<8x128xf32>
    %cst_23 = arith.constant 0.000000e+00 : f32
    %30 = vector.broadcast %cst_23 : f32 to vector<8x128xf32>
    %31 = arith.maximumf %29, %30 : vector<8x128xf32>
    %c0_24 = arith.constant 0 : index
    %c0_25 = arith.constant 0 : index
    %32 = vector.load %arg4[%c0_24, %c0_25] : memref<128x128xf32, #tpu.memory_space<vmem>>, vector<128x128xf32>
    %cst_26 = arith.constant dense<0.000000e+00> : vector<8x128xf32>
    %33 = tpu.matmul %31, %32, %cst_26 {dimension_numbers = #tpu.dot_dimension_numbers<[1], [0], [0], [1], [0, 0, 1, 1], [], []>} : vector<8x128xf32>, vector<128x128xf32>, vector<8x128xf32> -> vector<8x128xf32>
    %c4 = arith.constant 4 : index
    %c0_27 = arith.constant 0 : index
    %34 = vector.load %arg5[%c4, %c0_27] : memref<8x128xf32, #tpu.memory_space<vmem>>, vector<1x128xf32>
    %35 = vector.broadcast %34 : vector<1x128xf32> to vector<8x128xf32>
    %36 = arith.addf %33, %35 : vector<8x128xf32>
    %c0_28 = arith.constant 0 : index
    %c0_29 = arith.constant 0 : index
    %37 = vector.load %arg6[%c0_28, %c0_29] : memref<8x128xf32, #tpu.memory_space<vmem>>, vector<8x128xf32>
    tpu.vector_store %arg6[%c0_28, %c0_29], %36 {strides = array<i32>} : memref<8x128xf32, #tpu.memory_space<vmem>>, vector<8x128xf32>,
    return
  }
  func.func @transform_0(%arg0: i32) -> (i32, i32) {
    %c0_i32 = arith.constant 0 : i32
    %c0_i32_0 = arith.constant 0 : i32
    return %arg0, %c0_i32 : i32, i32
  }
  func.func @transform_1(%arg0: i32) -> (i32, i32) {
    %c0_i32 = arith.constant 0 : i32
    %c0_i32_0 = arith.constant 0 : i32
    %c0_i32_1 = arith.constant 0 : i32
    return %c0_i32, %c0_i32_0 : i32, i32
  }
  func.func @transform_2(%arg0: i32) -> (i32, i32, i32) {
    %c0_i32 = arith.constant 0 : i32
    %c0_i32_0 = arith.constant 0 : i32
    %c0_i32_1 = arith.constant 0 : i32
    %c0_i32_2 = arith.constant 0 : i32
    return %c0_i32, %c0_i32_0, %c0_i32_1 : i32, i32, i32
  }
  func.func @transform_3(%arg0: i32) -> (i32, i32) {
    %c0_i32 = arith.constant 0 : i32
    %c0_i32_0 = arith.constant 0 : i32
    %c0_i32_1 = arith.constant 0 : i32
    return %c0_i32, %c0_i32_0 : i32, i32
  }
  func.func @transform_4(%arg0: i32) -> (i32, i32) {
    %c0_i32 = arith.constant 0 : i32
    %c0_i32_0 = arith.constant 0 : i32
    %c0_i32_1 = arith.constant 0 : i32
    return %c0_i32, %c0_i32_0 : i32, i32
  }
  func.func @transform_5(%arg0: i32) -> (i32, i32) {
    %c0_i32 = arith.constant 0 : i32
    %c0_i32_0 = arith.constant 0 : i32
    return %arg0, %c0_i32 : i32, i32
  }
}

</mosaic_0001>

<llo_original>
// kernel: neural_network_forward.1
$region0: #{neural_network_forward.1}
  #allocation0 [shape = 'u32[]', space=smem, size = 0x4, offset = 0x4, fixed_abs, tag = 'smem constant byte address 0x4 - core index']
  #allocation1 [shape = 'u32[144,128]{1,0:T(1,128)}', space=vmem, size = 0x12000, scoped, tag = 'internal scratch']
  %s0 = inlined_call_operand.vmem [shape: f32[24,64], index: 0, kind: input, shape index: {}]
  %s1 = inlined_call_operand.hbm [shape: f32[64,128], index: 1, kind: input, shape index: {}]
  %s2 = inlined_call_operand.hbm [shape: f32[3,128,128], index: 2, kind: input, shape index: {}]
  %s3 = inlined_call_operand.hbm [shape: f32[128,128], index: 3, kind: input, shape index: {}]
  %s4 = inlined_call_operand.vmem [shape: f32[8,128], index: 4, kind: input, shape index: {}]
  %s5 = inlined_call_operand.vmem [shape: f32[24,128], index: 5, kind: output, shape index: {}]
  %s6 = sld [smem:[#allocation0]]
  $region65: #{neural_network_forward.1} parent=0
    _
  %s8 = ssub.s32 1, %s6
  %s9 = scalar_select 0, %s8, %s6
  $region1: #{neural_network_forward.1} parent=0
    #allocation2 [shape = 'u8[32768]{0}', space=vmem, size = 0x8000, scoped, tag = 'input window, operand 1, single buffered']
    #allocation3 [shape = 's32[2]{0}', space=sflag, size = 0x8, scoped, tag = 'scoped memory for neural_network_forward.1']
    #allocation4 [shape = 'u8[196608]{0}', space=vmem, size = 0x30000, scoped, tag = 'input window, operand 2, single buffered']
    #allocation5 [shape = 's32[1]{0}', space=sflag, size = 0x4, scoped, tag = 'scoped memory for neural_network_forward.1']
    #allocation6 [shape = 'u8[65536]{0}', space=vmem, size = 0x10000, scoped, tag = 'input window, operand 3, single buffered']
    %10 = vsyncpa [#allocation3], 0
    %11 = vsyncpa [#allocation5], 0
    loop: start=0, step=1, limit=5
    $region2: #{neural_network_forward.1} parent=1 // loop_pre_header
      _
    $region3: #{neural_network_forward.1} parent=1 // loop_header
      %s13 = sphi 0, %s17
      %p14 = scmp.ge.s32.totalorder %s13, 5
      %s23 = sphi 0, %s25
      %s26 = sphi 0, %s23
      %s27 = sphi 0, %s26
      %s43 = sphi 0, %s27
      %s47 = sphi 0, %s47
      %s49 = sphi 0, %s47
      %s50 = sphi 0, %s49
      %s64 = sphi 0, %s50
      %s68 = sphi 0, %s68
      %s70 = sphi 0, %s68
      %s71 = sphi 0, %s70
      %s85 = sphi 0, %s71
      %s89 = sphi 0, %s89
      %s91 = sphi 0, %s89
      %s92 = sphi 0, %s91
      %s106 = sphi 0, %s92
      %s110 = sphi 0, %s110
      %s112 = sphi 0, %s110
      %s113 = sphi 0, %s112
      %s127 = sphi 0, %s113
      %s133 = sphi 0, %s135
      %s136 = sphi 0, %s133
      %s137 = sphi 0, %s136
      %s153 = sphi 0, %s137
    $region4: #{neural_network_forward.1} parent=1 // loop_header_branch
      %16 = sbr.rel (%p14) target = $region8
    $region5: #{neural_network_forward.1} parent=1 // loop_body
      %s18 = ssub.s32 %s13, 1
      %s19 = ssub.s32 %s13, 2
      %s20 = sadd.s32 %s13, 1
      %s21 = ssub.s32 %s13, %s20
      %p22 = scmp.eq.s32.totalorder %s21, 0
      %s24 = sadd.s32 %s23, 1
      %s25 = scalar_select %p22, %s23, %s24
      %p28 = pneg %p22
      %p29 = scmp.eq.s32.totalorder %s13, 2
      %p30 = por %p28, %p29
      %p31 = scmp.ne.s32.totalorder %s23, %s26
      %p32 = scmp.eq.s32.totalorder %s13, 0
      %p33 = por %p31, %p32
      %p34 = scmp.ne.s32.totalorder %s23, %s26
      %p35 = scmp.eq.s32.totalorder %s18, 2
      %p36 = por %p34, %p35
      %p37 = scmp.ne.s32.totalorder %s26, %s27
      %p38 = scmp.eq.s32.totalorder %s18, 0
      %p39 = por %p37, %p38
      %p40 = scmp.ne.s32.totalorder %s26, %s27
      %p41 = scmp.eq.s32.totalorder %s19, 2
      %p42 = por %p40, %p41
      %p44 = scmp.ne.s32.totalorder %s27, %s43
      %p45 = scmp.eq.s32.totalorder %s19, 0
      %p46 = por %p44, %p45
      %s48 = sadd.s32 %s47, 1
      %p51 = scmp.eq.s32.totalorder %s13, 2
      %p52 = scmp.ne.s32.totalorder %s47, %s49
      %p53 = scmp.eq.s32.totalorder %s13, 0
      %p54 = por %p52, %p53
      %p55 = scmp.ne.s32.totalorder %s47, %s49
      %p56 = scmp.eq.s32.totalorder %s18, 2
      %p57 = por %p55, %p56
      %p58 = scmp.ne.s32.totalorder %s49, %s50
      %p59 = scmp.eq.s32.totalorder %s18, 0
      %p60 = por %p58, %p59
      %p61 = scmp.ne.s32.totalorder %s49, %s50
      %p62 = scmp.eq.s32.totalorder %s19, 2
      %p63 = por %p61, %p62
      %p65 = scmp.ne.s32.totalorder %s50, %s64
      %p66 = scmp.eq.s32.totalorder %s19, 0
      %p67 = por %p65, %p66
      %s69 = sadd.s32 %s68, 1
      %p72 = scmp.eq.s32.totalorder %s13, 2
      %p73 = scmp.ne.s32.totalorder %s68, %s70
      %p74 = scmp.eq.s32.totalorder %s13, 0
      %p75 = por %p73, %p74
      %p76 = scmp.ne.s32.totalorder %s68, %s70
      %p77 = scmp.eq.s32.totalorder %s18, 2
      %p78 = por %p76, %p77
      %p79 = scmp.ne.s32.totalorder %s70, %s71
      %p80 = scmp.eq.s32.totalorder %s18, 0
      %p81 = por %p79, %p80
      %p82 = scmp.ne.s32.totalorder %s70, %s71
      %p83 = scmp.eq.s32.totalorder %s19, 2
      %p84 = por %p82, %p83
      %p86 = scmp.ne.s32.totalorder %s71, %s85
      %p87 = scmp.eq.s32.totalorder %s19, 0
      %p88 = por %p86, %p87
      %s90 = sadd.s32 %s89, 1
      %p93 = scmp.eq.s32.totalorder %s13, 2
      %p94 = scmp.ne.s32.totalorder %s89, %s91
      %p95 = scmp.eq.s32.totalorder %s13, 0
      %p96 = por %p94, %p95
      %p97 = scmp.ne.s32.totalorder %s89, %s91
      %p98 = scmp.eq.s32.totalorder %s18, 2
      %p99 = por %p97, %p98
      %p100 = scmp.ne.s32.totalorder %s91, %s92
      %p101 = scmp.eq.s32.totalorder %s18, 0
      %p102 = por %p100, %p101
      %p103 = scmp.ne.s32.totalorder %s91, %s92
      %p104 = scmp.eq.s32.totalorder %s19, 2
      %p105 = por %p103, %p104
      %p107 = scmp.ne.s32.totalorder %s92, %s106
      %p108 = scmp.eq.s32.totalorder %s19, 0
      %p109 = por %p107, %p108
      %s111 = sadd.s32 %s110, 1
      %p114 = scmp.eq.s32.totalorder %s13, 2
      %p115 = scmp.ne.s32.totalorder %s110, %s112
      %p116 = scmp.eq.s32.totalorder %s13, 0
      %p117 = por %p115, %p116
      %p118 = scmp.ne.s32.totalorder %s110, %s112
      %p119 = scmp.eq.s32.totalorder %s18, 2
      %p120 = por %p118, %p119
      %p121 = scmp.ne.s32.totalorder %s112, %s113
      %p122 = scmp.eq.s32.totalorder %s18, 0
      %p123 = por %p121, %p122
      %p124 = scmp.ne.s32.totalorder %s112, %s113
      %p125 = scmp.eq.s32.totalorder %s19, 2
      %p126 = por %p124, %p125
      %p128 = scmp.ne.s32.totalorder %s113, %s127
      %p129 = scmp.eq.s32.totalorder %s19, 0
      %p130 = por %p128, %p129
      %s131 = ssub.s32 %s13, %s20
      %p132 = scmp.eq.s32.totalorder %s131, 0
      %s134 = sadd.s32 %s133, 1
      %s135 = scalar_select %p132, %s133, %s134
      %p138 = pneg %p132
      %p139 = scmp.eq.s32.totalorder %s13, 2
      %p140 = por %p138, %p139
      %p141 = scmp.ne.s32.totalorder %s133, %s136
      %p142 = scmp.eq.s32.totalorder %s13, 0
      %p143 = por %p141, %p142
      %p144 = scmp.ne.s32.totalorder %s133, %s136
      %p145 = scmp.eq.s32.totalorder %s18, 2
      %p146 = por %p144, %p145
      %p147 = scmp.ne.s32.totalorder %s136, %s137
      %p148 = scmp.eq.s32.totalorder %s18, 0
      %p149 = por %p147, %p148
      %p150 = scmp.ne.s32.totalorder %s136, %s137
      %p151 = scmp.eq.s32.totalorder %s19, 2
      %p152 = por %p150, %p151
      %p154 = scmp.ne.s32.totalorder %s137, %s153
      %p155 = scmp.eq.s32.totalorder %s19, 0
      %p156 = por %p154, %p155
      %p157 = scmp.le.s32.totalorder 1, %s13
      %p158 = scmp.lt.s32.totalorder %s13, 4
      %p159 = pnand %p157, %p158
      %p160 = pneg %p159
      // Predicated region
      $region9: #{neural_network_forward.1} parent=5 // pred_check
        _
      $region10: #{neural_network_forward.1} parent=5 // pred_check_branch
        %162 = sbr.rel (%p159) target = $region12
      $region11: #{neural_network_forward.1} parent=5 // pred_region
        %s163 = ssub.s32 %s13, 1
        // Predicated region
        $region13: #{neural_network_forward.1} parent=11 // pred_check
          %p164 = pneg %p60
        $region14: #{neural_network_forward.1} parent=11 // pred_check_branch
          %166 = sbr.rel (%p164) target = $region16
        $region15: #{neural_network_forward.1} parent=11 // pred_region
          %s168 = ssub.s32 1024, 1024
          %169 = vsyncadd [#allocation3], %s168
          %s170 = sshll.u32 [#allocation2], 4
          %s171 = int_to_ptr.vmem [resolvable:$true] %s170
          %176 = dma.hbm_to_vmem [thread:$0]  %s1, 1024, %s171, [#allocation3], 128, 128, 8
        $region16: #{neural_network_forward.1} parent=11 // pred_fallthru
          _
        // Predicated region
        $region17: #{neural_network_forward.1} parent=11 // pred_check
          %p177 = pneg %p81
        $region18: #{neural_network_forward.1} parent=11 // pred_check_branch
          %179 = sbr.rel (%p177) target = $region20
        $region19: #{neural_network_forward.1} parent=11 // pred_region
          %s181 = ssub.s32 6144, 6144
          %182 = vsyncadd [#allocation5], %s181
          %s183 = sshll.u32 [#allocation4], 4
          %s184 = int_to_ptr.vmem [resolvable:$true] %s183
          %189 = dma.hbm_to_vmem [thread:$0]  %s2, 6144, %s184, [#allocation5], 128, 128, 8
        $region20: #{neural_network_forward.1} parent=11 // pred_fallthru
          _
        // Predicated region
        $region21: #{neural_network_forward.1} parent=11 // pred_check
          %p190 = pneg %p102
        $region22: #{neural_network_forward.1} parent=11 // pred_check_branch
          %192 = sbr.rel (%p190) target = $region24
        $region23: #{neural_network_forward.1} parent=11 // pred_region
          %s194 = ssub.s32 2048, 2048
          %195 = vsyncadd [#allocation5], %s194
          %s196 = sshll.u32 [#allocation6], 4
          %s197 = int_to_ptr.vmem [resolvable:$true] %s196
          %202 = dma.hbm_to_vmem [thread:$0]  %s3, 2048, %s197, [#allocation5], 128, 128, 8
        $region24: #{neural_network_forward.1} parent=11 // pred_fallthru
          _
        // Predicated region
        $region25: #{neural_network_forward.1} parent=11 // pred_check
          %p203 = pneg %p123
        $region26: #{neural_network_forward.1} parent=11 // pred_check_branch
          %205 = sbr.rel (%p203) target = $region28
        $region27: #{neural_network_forward.1} parent=11 // pred_region
          _
        $region28: #{neural_network_forward.1} parent=11 // pred_fallthru
          _
      $region12: #{neural_network_forward.1} parent=5 // pred_fallthru
        _
      %p206 = scmp.lt.s32.totalorder %s13, 3
      // Predicated region
      $region29: #{neural_network_forward.1} parent=5 // pred_check
        %p207 = pneg %p206
      $region30: #{neural_network_forward.1} parent=5 // pred_check_branch
        %209 = sbr.rel (%p207) target = $region32
      $region31: #{neural_network_forward.1} parent=5 // pred_region
        // Predicated region
        $region33: #{neural_network_forward.1} parent=31 // pred_check
          %p210 = pneg %p33
        $region34: #{neural_network_forward.1} parent=31 // pred_check_branch
          %212 = sbr.rel (%p210) target = $region36
        $region35: #{neural_network_forward.1} parent=31 // pred_region
          %p213 = scmp.lt.s32.totalorder %s13, 2
          %s214 = scalar_select %p213, %s13, 2
          %s215 = smul.addr %s214, 8
          %s216 = scalar_lea.vmem %s0, %s215
        $region36: #{neural_network_forward.1} parent=31 // pred_fallthru
          _
      $region32: #{neural_network_forward.1} parent=5 // pred_fallthru
        _
      %p217 = scmp.le.s32.totalorder 1, %s13
      %p218 = scmp.lt.s32.totalorder %s13, 4
      %p219 = pnand %p217, %p218
      %p220 = pneg %p219
      // Predicated region
      $region37: #{neural_network_forward.1} parent=5 // pred_check
        _
      $region38: #{neural_network_forward.1} parent=5 // pred_check_branch
        %222 = sbr.rel (%p219) target = $region40
      $region39: #{neural_network_forward.1} parent=5 // pred_region
        %s223 = ssub.s32 %s13, 1
        // Predicated region
        $region41: #{neural_network_forward.1} parent=39 // pred_check
          %p224 = pneg %p60
        $region42: #{neural_network_forward.1} parent=39 // pred_check_branch
          %226 = sbr.rel (%p224) target = $region44
        $region43: #{neural_network_forward.1} parent=39 // pred_region
          %227 = dma.done [#allocation3], 1024
        $region44: #{neural_network_forward.1} parent=39 // pred_fallthru
          _
        // Predicated region
        $region45: #{neural_network_forward.1} parent=39 // pred_check
          %p228 = pneg %p81
        $region46: #{neural_network_forward.1} parent=39 // pred_check_branch
          %230 = sbr.rel (%p228) target = $region48
        $region47: #{neural_network_forward.1} parent=39 // pred_region
          %231 = dma.done [#allocation5], 6144
        $region48: #{neural_network_forward.1} parent=39 // pred_fallthru
          _
        // Predicated region
        $region49: #{neural_network_forward.1} parent=39 // pred_check
          %p232 = pneg %p102
        $region50: #{neural_network_forward.1} parent=39 // pred_check_branch
          %234 = sbr.rel (%p232) target = $region52
        $region51: #{neural_network_forward.1} parent=39 // pred_region
          %235 = dma.done [#allocation5], 2048
        $region52: #{neural_network_forward.1} parent=39 // pred_fallthru
          _
        %p236 = scmp.lt.s32.totalorder %s18, 2
        %s237 = scalar_select %p236, %s18, 2
        %s238 = smul.addr %s237, 8
        %s239 = scalar_lea.vmem %s0, %s238
        %p240 = pneg %p39
        %p241 = pneg %p36
        %p242 = pneg %p60
        %p243 = pneg %p57
        %p244 = pneg %p81
        %p245 = pneg %p78
        %p246 = pneg %p102
        %p247 = pneg %p99
        %p248 = pneg %p123
        %p249 = pneg %p120
        %p250 = pneg %p149
        %p251 = pneg %p146
        %p252 = scmp.lt.s32.totalorder %s18, 2
        %s253 = scalar_select %p252, %s18, 2
        %s254 = smul.addr %s253, 8
        %s255 = scalar_lea.vmem %s5, %s254
        %p256 = scmp.lt.s32.totalorder %s18, 2
        %s257 = scalar_select %p256, %s18, 2
        %s258 = smul.addr %s257, 8
        %s259 = scalar_lea.vmem %s0, %s258
        %p260 = scmp.lt.s32.totalorder %s18, 2
        %s261 = scalar_select %p260, %s18, 2
        %s262 = smul.addr %s261, 8
        %s263 = scalar_lea.vmem %s5, %s262
        %v264 = vld [vmem:[%s259] sm:$0xff]
        %v265 = vld [vmem:[#allocation2] sm:$0xff]
        %v266 = vld [vmem:[#allocation2 + $0x8] sm:$0xff]
        %v267 = vld [vmem:[#allocation2 + $0x10] sm:$0xff]
        %v268 = vld [vmem:[#allocation2 + $0x18] sm:$0xff]
        %v269 = vld [vmem:[#allocation2 + $0x20] sm:$0xff]
        %v270 = vld [vmem:[#allocation2 + $0x28] sm:$0xff]
        %v271 = vld [vmem:[#allocation2 + $0x30] sm:$0xff]
        %v272 = vld [vmem:[#allocation2 + $0x38] sm:$0xff]
        %v273 = vld [vmem:[%s4] sm:$0x1]
        %v274 = vlaneseq
        %v275 = vshrl.u32 %v274, 7
        %v276 = vsub.s32 0, %v275
        %v277 = vrot.slane %v273, %v276
        %vm278 = vcmask 523264
        %v280 = vsel %vm278, %v264, 0
        %282 = vmatprep.subr.mxu0 0.0
        %283 = vmatpush1.msra.mxu0 %v265
        %284 = vmatprep.subr.mxu0 0.0
        %285 = vmatpush1.msra.mxu0 %v266
        %286 = vmatprep.subr.mxu0 0.0
        %287 = vmatpush1.msra.mxu0 %v267
        %288 = vmatprep.subr.mxu0 0.0
        %289 = vmatpush1.msra.mxu0 %v268
        %290 = vmatprep.subr.mxu0 0.0
        %291 = vmatpush1.msra.mxu0 %v269
        %292 = vmatprep.subr.mxu0 0.0
        %293 = vmatpush1.msra.mxu0 %v270
        %294 = vmatprep.subr.mxu0 0.0
        %295 = vmatpush1.msra.mxu0 %v271
        %296 = vmatprep.subr.mxu0 0.0
        %297 = vmatpush1.msra.mxu0 %v272
        %298 = vmatprep.subr.mxu0 0.0
        %299 = vmatpush1.msra.mxu0 0.0
        %300 = vmatprep.subr.mxu0 0.0
        %301 = vmatpush1.msra.mxu0 0.0
        %302 = vmatprep.subr.mxu0 0.0
        %303 = vmatpush1.msra.mxu0 0.0
        %304 = vmatprep.subr.mxu0 0.0
        %305 = vmatpush1.msra.mxu0 0.0
        %306 = vmatprep.subr.mxu0 0.0
        %307 = vmatpush1.msra.mxu0 0.0
        %308 = vmatprep.subr.mxu0 0.0
        %309 = vmatpush1.msra.mxu0 0.0
        %310 = vmatprep.subr.mxu0 0.0
        %311 = vmatpush1.msra.mxu0 0.0
        %312 = vmatprep.subr.mxu0 0.0
        %313 = vmatpush1.msra.mxu0 0.0
        %314 = vmatprep.subr.mxu0 0.0
        %315 = vmatpush1.msra.mxu0 0.0
        %316 = vmatprep.subr.mxu0 0.0
        %317 = vmatpush1.msra.mxu0 0.0
        %318 = vmatprep.subr.mxu0 0.0
        %319 = vmatpush1.msra.mxu0 0.0
        %320 = vmatprep.subr.mxu0 0.0
        %321 = vmatpush1.msra.mxu0 0.0
        %322 = vmatprep.subr.mxu0 0.0
        %323 = vmatpush1.msra.mxu0 0.0
        %324 = vmatprep.subr.mxu0 0.0
        %325 = vmatpush1.msra.mxu0 0.0
        %326 = vmatprep.subr.mxu0 0.0
        %327 = vmatpush1.msra.mxu0 0.0
        %328 = vmatprep.subr.mxu0 0.0
        %329 = vmatpush1.msra.mxu0 0.0
        %330 = vmatprep.subr.mxu0 0.0
        %331 = vmatpush1.msra.mxu0 0.0
        %332 = vmatprep.subr.mxu0 0.0
        %333 = vmatpush1.msra.mxu0 0.0
        %334 = vmatprep.subr.mxu0 0.0
        %335 = vmatpush1.msra.mxu0 0.0
        %336 = vmatprep.subr.mxu0 0.0
        %337 = vmatpush1.msra.mxu0 0.0
        %338 = vmatprep.subr.mxu0 0.0
        %339 = vmatpush1.msra.mxu0 0.0
        %340 = vmatprep.subr.mxu0 0.0
        %341 = vmatpush1.msra.mxu0 0.0
        %342 = vmatprep.subr.mxu0 0.0
        %343 = vmatpush1.msra.mxu0 0.0
        %344 = vmatprep.subr.mxu0 0.0
        %345 = vmatpush1.msra.mxu0 0.0
        %346 = vmatprep.mubr.f32.mxu0 0.0
        %347 = vmatmul.mubr.f32.gmra.mrb[0].mxu0 %v280
        %v348 = vpop.f32.mrb[0].mxu0
        %v349 = vadd.f32 %v277, %v348
        %v350 = vpop.f32.mrb[0].mxu0
        %351 = vdwg.mxu0
        %v352 = vmax.f32 %v349, 0.0
        %v353 = vld [vmem:[#allocation4] sm:$0xff]
        %v354 = vld [vmem:[#allocation4 + $0x8] sm:$0xff]
        %v355 = vld [vmem:[#allocation4 + $0x10] sm:$0xff]
        %v356 = vld [vmem:[#allocation4 + $0x18] sm:$0xff]
        %v357 = vld [vmem:[#allocation4 + $0x20] sm:$0xff]
        %v358 = vld [vmem:[#allocation4 + $0x28] sm:$0xff]
        %v359 = vld [vmem:[#allocation4 + $0x30] sm:$0xff]
        %v360 = vld [vmem:[#allocation4 + $0x38] sm:$0xff]
        %v361 = vld [vmem:[#allocation4 + $0x40] sm:$0xff]
        %v362 = vld [vmem:[#allocation4 + $0x48] sm:$0xff]
        %v363 = vld [vmem:[#allocation4 + $0x50] sm:$0xff]
        %v364 = vld [vmem:[#allocation4 + $0x58] sm:$0xff]
        %v365 = vld [vmem:[#allocation4 + $0x60] sm:$0xff]
        %v366 = vld [vmem:[#allocation4 + $0x68] sm:$0xff]
        %v367 = vld [vmem:[#allocation4 + $0x70] sm:$0xff]
        %v368 = vld [vmem:[#allocation4 + $0x78] sm:$0xff]
        %v369 = vld [vmem:[%s4 + $0x1] sm:$0x1]
        %v370 = vlaneseq
        %v371 = vshrl.u32 %v370, 7
        %v372 = vsub.s32 0, %v371
        %v373 = vrot.slane %v369, %v372
        %374 = vmatprep.subr.mxu0 0.0
        %375 = vmatpush1.msra.mxu0 %v353
        %376 = vmatprep.subr.mxu0 0.0
        %377 = vmatpush1.msra.mxu0 %v354
        %378 = vmatprep.subr.mxu0 0.0
        %379 = vmatpush1.msra.mxu0 %v355
        %380 = vmatprep.subr.mxu0 0.0
        %381 = vmatpush1.msra.mxu0 %v356
        %382 = vmatprep.subr.mxu0 0.0
        %383 = vmatpush1.msra.mxu0 %v357
        %384 = vmatprep.subr.mxu0 0.0
        %385 = vmatpush1.msra.mxu0 %v358
        %386 = vmatprep.subr.mxu0 0.0
        %387 = vmatpush1.msra.mxu0 %v359
        %388 = vmatprep.subr.mxu0 0.0
        %389 = vmatpush1.msra.mxu0 %v360
        %390 = vmatprep.subr.mxu0 0.0
        %391 = vmatpush1.msra.mxu0 %v361
        %392 = vmatprep.subr.mxu0 0.0
        %393 = vmatpush1.msra.mxu0 %v362
        %394 = vmatprep.subr.mxu0 0.0
        %395 = vmatpush1.msra.mxu0 %v363
        %396 = vmatprep.subr.mxu0 0.0
        %397 = vmatpush1.msra.mxu0 %v364
        %398 = vmatprep.subr.mxu0 0.0
        %399 = vmatpush1.msra.mxu0 %v365
        %400 = vmatprep.subr.mxu0 0.0
        %401 = vmatpush1.msra.mxu0 %v366
        %402 = vmatprep.subr.mxu0 0.0
        %403 = vmatpush1.msra.mxu0 %v367
        %404 = vmatprep.subr.mxu0 0.0
        %405 = vmatpush1.msra.mxu0 %v368
        %406 = vmatprep.subr.mxu0 0.0
        %407 = vmatpush1.msra.mxu0 0.0
        %408 = vmatprep.subr.mxu0 0.0
        %409 = vmatpush1.msra.mxu0 0.0
        %410 = vmatprep.subr.mxu0 0.0
        %411 = vmatpush1.msra.mxu0 0.0
        %412 = vmatprep.subr.mxu0 0.0
        %413 = vmatpush1.msra.mxu0 0.0
        %414 = vmatprep.subr.mxu0 0.0
        %415 = vmatpush1.msra.mxu0 0.0
        %416 = vmatprep.subr.mxu0 0.0
        %417 = vmatpush1.msra.mxu0 0.0
        %418 = vmatprep.subr.mxu0 0.0
        %419 = vmatpush1.msra.mxu0 0.0
        %420 = vmatprep.subr.mxu0 0.0
        %421 = vmatpush1.msra.mxu0 0.0
        %422 = vmatprep.subr.mxu0 0.0
        %423 = vmatpush1.msra.mxu0 0.0
        %424 = vmatprep.subr.mxu0 0.0
        %425 = vmatpush1.msra.mxu0 0.0
        %426 = vmatprep.subr.mxu0 0.0
        %427 = vmatpush1.msra.mxu0 0.0
        %428 = vmatprep.subr.mxu0 0.0
        %429 = vmatpush1.msra.mxu0 0.0
        %430 = vmatprep.subr.mxu0 0.0
        %431 = vmatpush1.msra.mxu0 0.0
        %432 = vmatprep.subr.mxu0 0.0
        %433 = vmatpush1.msra.mxu0 0.0
        %434 = vmatprep.subr.mxu0 0.0
        %435 = vmatpush1.msra.mxu0 0.0
        %436 = vmatprep.subr.mxu0 0.0
        %437 = vmatpush1.msra.mxu0 0.0
        %438 = vmatprep.mubr.f32.mxu0 0.0
        %439 = vmatmul.mubr.f32.gmra.mrb[0].mxu0 %v352
        %v440 = vpop.f32.mrb[0].mxu0
        %v441 = vadd.f32 %v373, %v440
        %v442 = vpop.f32.mrb[0].mxu0
        %443 = vdwg.mxu0
        %v444 = vmax.f32 %v441, 0.0
        %s445 = scalar_lea.vmem [#allocation4], 128
        %v446 = vld [vmem:[%s445] sm:$0xff]
        %v447 = vld [vmem:[%s445 + $0x8] sm:$0xff]
        %v448 = vld [vmem:[%s445 + $0x10] sm:$0xff]
        %v449 = vld [vmem:[%s445 + $0x18] sm:$0xff]
        %v450 = vld [vmem:[%s445 + $0x20] sm:$0xff]
        %v451 = vld [vmem:[%s445 + $0x28] sm:$0xff]
        %v452 = vld [vmem:[%s445 + $0x30] sm:$0xff]
        %v453 = vld [vmem:[%s445 + $0x38] sm:$0xff]
        %v454 = vld [vmem:[%s445 + $0x40] sm:$0xff]
        %v455 = vld [vmem:[%s445 + $0x48] sm:$0xff]
        %v456 = vld [vmem:[%s445 + $0x50] sm:$0xff]
        %v457 = vld [vmem:[%s445 + $0x58] sm:$0xff]
        %v458 = vld [vmem:[%s445 + $0x60] sm:$0xff]
        %v459 = vld [vmem:[%s445 + $0x68] sm:$0xff]
        %v460 = vld [vmem:[%s445 + $0x70] sm:$0xff]
        %v461 = vld [vmem:[%s445 + $0x78] sm:$0xff]
        %v462 = vld [vmem:[%s4 + $0x2] sm:$0x1]
        %v463 = vlaneseq
        %v464 = vshrl.u32 %v463, 7
        %v465 = vsub.s32 0, %v464
        %v466 = vrot.slane %v462, %v465
        %467 = vmatprep.subr.mxu0 0.0
        %468 = vmatpush1.msra.mxu0 %v446
        %469 = vmatprep.subr.mxu0 0.0
        %470 = vmatpush1.msra.mxu0 %v447
        %471 = vmatprep.subr.mxu0 0.0
        %472 = vmatpush1.msra.mxu0 %v448
        %473 = vmatprep.subr.mxu0 0.0
        %474 = vmatpush1.msra.mxu0 %v449
        %475 = vmatprep.subr.mxu0 0.0
        %476 = vmatpush1.msra.mxu0 %v450
        %477 = vmatprep.subr.mxu0 0.0
        %478 = vmatpush1.msra.mxu0 %v451
        %479 = vmatprep.subr.mxu0 0.0
        %480 = vmatpush1.msra.mxu0 %v452
        %481 = vmatprep.subr.mxu0 0.0
        %482 = vmatpush1.msra.mxu0 %v453
        %483 = vmatprep.subr.mxu0 0.0
        %484 = vmatpush1.msra.mxu0 %v454
        %485 = vmatprep.subr.mxu0 0.0
        %486 = vmatpush1.msra.mxu0 %v455
        %487 = vmatprep.subr.mxu0 0.0
        %488 = vmatpush1.msra.mxu0 %v456
        %489 = vmatprep.subr.mxu0 0.0
        %490 = vmatpush1.msra.mxu0 %v457
        %491 = vmatprep.subr.mxu0 0.0
        %492 = vmatpush1.msra.mxu0 %v458
        %493 = vmatprep.subr.mxu0 0.0
        %494 = vmatpush1.msra.mxu0 %v459
        %495 = vmatprep.subr.mxu0 0.0
        %496 = vmatpush1.msra.mxu0 %v460
        %497 = vmatprep.subr.mxu0 0.0
        %498 = vmatpush1.msra.mxu0 %v461
        %499 = vmatprep.subr.mxu0 0.0
        %500 = vmatpush1.msra.mxu0 0.0
        %501 = vmatprep.subr.mxu0 0.0
        %502 = vmatpush1.msra.mxu0 0.0
        %503 = vmatprep.subr.mxu0 0.0
        %504 = vmatpush1.msra.mxu0 0.0
        %505 = vmatprep.subr.mxu0 0.0
        %506 = vmatpush1.msra.mxu0 0.0
        %507 = vmatprep.subr.mxu0 0.0
        %508 = vmatpush1.msra.mxu0 0.0
        %509 = vmatprep.subr.mxu0 0.0
        %510 = vmatpush1.msra.mxu0 0.0
        %511 = vmatprep.subr.mxu0 0.0
        %512 = vmatpush1.msra.mxu0 0.0
        %513 = vmatprep.subr.mxu0 0.0
        %514 = vmatpush1.msra.mxu0 0.0
        %515 = vmatprep.subr.mxu0 0.0
        %516 = vmatpush1.msra.mxu0 0.0
        %517 = vmatprep.subr.mxu0 0.0
        %518 = vmatpush1.msra.mxu0 0.0
        %519 = vmatprep.subr.mxu0 0.0
        %520 = vmatpush1.msra.mxu0 0.0
        %521 = vmatprep.subr.mxu0 0.0
        %522 = vmatpush1.msra.mxu0 0.0
        %523 = vmatprep.subr.mxu0 0.0
        %524 = vmatpush1.msra.mxu0 0.0
        %525 = vmatprep.subr.mxu0 0.0
        %526 = vmatpush1.msra.mxu0 0.0
        %527 = vmatprep.subr.mxu0 0.0
        %528 = vmatpush1.msra.mxu0 0.0
        %529 = vmatprep.subr.mxu0 0.0
        %530 = vmatpush1.msra.mxu0 0.0
        %531 = vmatprep.mubr.f32.mxu0 0.0
        %532 = vmatmul.mubr.f32.gmra.mrb[0].mxu0 %v444
        %v533 = vpop.f32.mrb[0].mxu0
        %v534 = vadd.f32 %v466, %v533
        %v535 = vpop.f32.mrb[0].mxu0
        %536 = vdwg.mxu0
        %v537 = vmax.f32 %v534, 0.0
        %s538 = scalar_lea.vmem [#allocation4], 256
        %v539 = vld [vmem:[%s538] sm:$0xff]
        %v540 = vld [vmem:[%s538 + $0x8] sm:$0xff]
        %v541 = vld [vmem:[%s538 + $0x10] sm:$0xff]
        %v542 = vld [vmem:[%s538 + $0x18] sm:$0xff]
        %v543 = vld [vmem:[%s538 + $0x20] sm:$0xff]
        %v544 = vld [vmem:[%s538 + $0x28] sm:$0xff]
        %v545 = vld [vmem:[%s538 + $0x30] sm:$0xff]
        %v546 = vld [vmem:[%s538 + $0x38] sm:$0xff]
        %v547 = vld [vmem:[%s538 + $0x40] sm:$0xff]
        %v548 = vld [vmem:[%s538 + $0x48] sm:$0xff]
        %v549 = vld [vmem:[%s538 + $0x50] sm:$0xff]
        %v550 = vld [vmem:[%s538 + $0x58] sm:$0xff]
        %v551 = vld [vmem:[%s538 + $0x60] sm:$0xff]
        %v552 = vld [vmem:[%s538 + $0x68] sm:$0xff]
        %v553 = vld [vmem:[%s538 + $0x70] sm:$0xff]
        %v554 = vld [vmem:[%s538 + $0x78] sm:$0xff]
        %v555 = vld [vmem:[%s4 + $0x3] sm:$0x1]
        %v556 = vlaneseq
        %v557 = vshrl.u32 %v556, 7
        %v558 = vsub.s32 0, %v557
        %v559 = vrot.slane %v555, %v558
        %560 = vmatprep.subr.mxu0 0.0
        %561 = vmatpush1.msra.mxu0 %v539
        %562 = vmatprep.subr.mxu0 0.0
        %563 = vmatpush1.msra.mxu0 %v540
        %564 = vmatprep.subr.mxu0 0.0
        %565 = vmatpush1.msra.mxu0 %v541
        %566 = vmatprep.subr.mxu0 0.0
        %567 = vmatpush1.msra.mxu0 %v542
        %568 = vmatprep.subr.mxu0 0.0
        %569 = vmatpush1.msra.mxu0 %v543
        %570 = vmatprep.subr.mxu0 0.0
        %571 = vmatpush1.msra.mxu0 %v544
        %572 = vmatprep.subr.mxu0 0.0
        %573 = vmatpush1.msra.mxu0 %v545
        %574 = vmatprep.subr.mxu0 0.0
        %575 = vmatpush1.msra.mxu0 %v546
        %576 = vmatprep.subr.mxu0 0.0
        %577 = vmatpush1.msra.mxu0 %v547
        %578 = vmatprep.subr.mxu0 0.0
        %579 = vmatpush1.msra.mxu0 %v548
        %580 = vmatprep.subr.mxu0 0.0
        %581 = vmatpush1.msra.mxu0 %v549
        %582 = vmatprep.subr.mxu0 0.0
        %583 = vmatpush1.msra.mxu0 %v550
        %584 = vmatprep.subr.mxu0 0.0
        %585 = vmatpush1.msra.mxu0 %v551
        %586 = vmatprep.subr.mxu0 0.0
        %587 = vmatpush1.msra.mxu0 %v552
        %588 = vmatprep.subr.mxu0 0.0
        %589 = vmatpush1.msra.mxu0 %v553
        %590 = vmatprep.subr.mxu0 0.0
        %591 = vmatpush1.msra.mxu0 %v554
        %592 = vmatprep.subr.mxu0 0.0
        %593 = vmatpush1.msra.mxu0 0.0
        %594 = vmatprep.subr.mxu0 0.0
        %595 = vmatpush1.msra.mxu0 0.0
        %596 = vmatprep.subr.mxu0 0.0
        %597 = vmatpush1.msra.mxu0 0.0
        %598 = vmatprep.subr.mxu0 0.0
        %599 = vmatpush1.msra.mxu0 0.0
        %600 = vmatprep.subr.mxu0 0.0
        %601 = vmatpush1.msra.mxu0 0.0
        %602 = vmatprep.subr.mxu0 0.0
        %603 = vmatpush1.msra.mxu0 0.0
        %604 = vmatprep.subr.mxu0 0.0
        %605 = vmatpush1.msra.mxu0 0.0
        %606 = vmatprep.subr.mxu0 0.0
        %607 = vmatpush1.msra.mxu0 0.0
        %608 = vmatprep.subr.mxu0 0.0
        %609 = vmatpush1.msra.mxu0 0.0
        %610 = vmatprep.subr.mxu0 0.0
        %611 = vmatpush1.msra.mxu0 0.0
        %612 = vmatprep.subr.mxu0 0.0
        %613 = vmatpush1.msra.mxu0 0.0
        %614 = vmatprep.subr.mxu0 0.0
        %615 = vmatpush1.msra.mxu0 0.0
        %616 = vmatprep.subr.mxu0 0.0
        %617 = vmatpush1.msra.mxu0 0.0
        %618 = vmatprep.subr.mxu0 0.0
        %619 = vmatpush1.msra.mxu0 0.0
        %620 = vmatprep.subr.mxu0 0.0
        %621 = vmatpush1.msra.mxu0 0.0
        %622 = vmatprep.subr.mxu0 0.0
        %623 = vmatpush1.msra.mxu0 0.0
        %624 = vmatprep.mubr.f32.mxu0 0.0
        %625 = vmatmul.mubr.f32.gmra.mrb[0].mxu0 %v537
        %v626 = vpop.f32.mrb[0].mxu0
        %v627 = vadd.f32 %v559, %v626
        %v628 = vpop.f32.mrb[0].mxu0
        %629 = vdwg.mxu0
        %v630 = vmax.f32 %v627, 0.0
        %v631 = vld [vmem:[#allocation6] sm:$0xff]
        %v632 = vld [vmem:[#allocation6 + $0x8] sm:$0xff]
        %v633 = vld [vmem:[#allocation6 + $0x10] sm:$0xff]
        %v634 = vld [vmem:[#allocation6 + $0x18] sm:$0xff]
        %v635 = vld [vmem:[#allocation6 + $0x20] sm:$0xff]
        %v636 = vld [vmem:[#allocation6 + $0x28] sm:$0xff]
        %v637 = vld [vmem:[#allocation6 + $0x30] sm:$0xff]
        %v638 = vld [vmem:[#allocation6 + $0x38] sm:$0xff]
        %v639 = vld [vmem:[#allocation6 + $0x40] sm:$0xff]
        %v640 = vld [vmem:[#allocation6 + $0x48] sm:$0xff]
        %v641 = vld [vmem:[#allocation6 + $0x50] sm:$0xff]
        %v642 = vld [vmem:[#allocation6 + $0x58] sm:$0xff]
        %v643 = vld [vmem:[#allocation6 + $0x60] sm:$0xff]
        %v644 = vld [vmem:[#allocation6 + $0x68] sm:$0xff]
        %v645 = vld [vmem:[#allocation6 + $0x70] sm:$0xff]
        %v646 = vld [vmem:[#allocation6 + $0x78] sm:$0xff]
        %v647 = vld [vmem:[%s4 + $0x4] sm:$0x1]
        %v648 = vlaneseq
        %v649 = vshrl.u32 %v648, 7
        %v650 = vsub.s32 0, %v649
        %v651 = vrot.slane %v647, %v650
        %652 = vmatprep.subr.mxu0 0.0
        %653 = vmatpush1.msra.mxu0 %v631
        %654 = vmatprep.subr.mxu0 0.0
        %655 = vmatpush1.msra.mxu0 %v632
        %656 = vmatprep.subr.mxu0 0.0
        %657 = vmatpush1.msra.mxu0 %v633
        %658 = vmatprep.subr.mxu0 0.0
        %659 = vmatpush1.msra.mxu0 %v634
        %660 = vmatprep.subr.mxu0 0.0
        %661 = vmatpush1.msra.mxu0 %v635
        %662 = vmatprep.subr.mxu0 0.0
        %663 = vmatpush1.msra.mxu0 %v636
        %664 = vmatprep.subr.mxu0 0.0
        %665 = vmatpush1.msra.mxu0 %v637
        %666 = vmatprep.subr.mxu0 0.0
        %667 = vmatpush1.msra.mxu0 %v638
        %668 = vmatprep.subr.mxu0 0.0
        %669 = vmatpush1.msra.mxu0 %v639
        %670 = vmatprep.subr.mxu0 0.0
        %671 = vmatpush1.msra.mxu0 %v640
        %672 = vmatprep.subr.mxu0 0.0
        %673 = vmatpush1.msra.mxu0 %v641
        %674 = vmatprep.subr.mxu0 0.0
        %675 = vmatpush1.msra.mxu0 %v642
        %676 = vmatprep.subr.mxu0 0.0
        %677 = vmatpush1.msra.mxu0 %v643
        %678 = vmatprep.subr.mxu0 0.0
        %679 = vmatpush1.msra.mxu0 %v644
        %680 = vmatprep.subr.mxu0 0.0
        %681 = vmatpush1.msra.mxu0 %v645
        %682 = vmatprep.subr.mxu0 0.0
        %683 = vmatpush1.msra.mxu0 %v646
        %684 = vmatprep.subr.mxu0 0.0
        %685 = vmatpush1.msra.mxu0 0.0
        %686 = vmatprep.subr.mxu0 0.0
        %687 = vmatpush1.msra.mxu0 0.0
        %688 = vmatprep.subr.mxu0 0.0
        %689 = vmatpush1.msra.mxu0 0.0
        %690 = vmatprep.subr.mxu0 0.0
        %691 = vmatpush1.msra.mxu0 0.0
        %692 = vmatprep.subr.mxu0 0.0
        %693 = vmatpush1.msra.mxu0 0.0
        %694 = vmatprep.subr.mxu0 0.0
        %695 = vmatpush1.msra.mxu0 0.0
        %696 = vmatprep.subr.mxu0 0.0
        %697 = vmatpush1.msra.mxu0 0.0
        %698 = vmatprep.subr.mxu0 0.0
        %699 = vmatpush1.msra.mxu0 0.0
        %700 = vmatprep.subr.mxu0 0.0
        %701 = vmatpush1.msra.mxu0 0.0
        %702 = vmatprep.subr.mxu0 0.0
        %703 = vmatpush1.msra.mxu0 0.0
        %704 = vmatprep.subr.mxu0 0.0
        %705 = vmatpush1.msra.mxu0 0.0
        %706 = vmatprep.subr.mxu0 0.0
        %707 = vmatpush1.msra.mxu0 0.0
        %708 = vmatprep.subr.mxu0 0.0
        %709 = vmatpush1.msra.mxu0 0.0
        %710 = vmatprep.subr.mxu0 0.0
        %711 = vmatpush1.msra.mxu0 0.0
        %712 = vmatprep.subr.mxu0 0.0
        %713 = vmatpush1.msra.mxu0 0.0
        %714 = vmatprep.subr.mxu0 0.0
        %715 = vmatpush1.msra.mxu0 0.0
        %716 = vmatprep.mubr.f32.mxu0 0.0
        %717 = vmatmul.mubr.f32.gmra.mrb[0].mxu0 %v630
        %v718 = vpop.f32.mrb[0].mxu0
        %v719 = vadd.f32 %v651, %v718
        %v720 = vpop.f32.mrb[0].mxu0
        %721 = vdwg.mxu0
        %722 = vst [vmem:[%s263] sm:$0xff] %v719
        %p723 = scmp.lt.s32.totalorder %s18, 2
        %s724 = scalar_select %p723, %s18, 2
        %s725 = smul.addr %s724, 8
        %s726 = scalar_lea.vmem %s5, %s725
        // Predicated region
        $region53: #{neural_network_forward.1} parent=39 // pred_check
          %p727 = pneg %p146
        $region54: #{neural_network_forward.1} parent=39 // pred_check_branch
          %729 = sbr.rel (%p727) target = $region56
        $region55: #{neural_network_forward.1} parent=39 // pred_region
          _
        $region56: #{neural_network_forward.1} parent=39 // pred_fallthru
          _
      $region40: #{neural_network_forward.1} parent=5 // pred_fallthru
        _
      %p730 = scmp.le.s32.totalorder 2, %s13
      // Predicated region
      $region57: #{neural_network_forward.1} parent=5 // pred_check
        %p731 = pneg %p730
      $region58: #{neural_network_forward.1} parent=5 // pred_check_branch
        %733 = sbr.rel (%p731) target = $region60
      $region59: #{neural_network_forward.1} parent=5 // pred_region
        %s734 = ssub.s32 %s13, 2
        // Predicated region
        $region61: #{neural_network_forward.1} parent=59 // pred_check
          %p735 = pneg %p152
        $region62: #{neural_network_forward.1} parent=59 // pred_check_branch
          %737 = sbr.rel (%p735) target = $region64
        $region63: #{neural_network_forward.1} parent=59 // pred_region
          %p738 = scmp.lt.s32.totalorder %s19, 2
          %s739 = scalar_select %p738, %s19, 2
          %s740 = smul.addr %s739, 8
          %s741 = scalar_lea.vmem %s5, %s740
        $region64: #{neural_network_forward.1} parent=59 // pred_fallthru
          _
      $region60: #{neural_network_forward.1} parent=5 // pred_fallthru
        _
    $region6: #{neural_network_forward.1} parent=1 // loop_footer
      %s17 = sadd.s32 1, %s13
    $region7: #{neural_network_forward.1} parent=1 // loop_footer_branch
      %12 = sbr.rel target = $region3
    $region8: #{neural_network_forward.1} parent=1 // loop_exit
      _
    %742 = vsyncpa [#allocation3], 1
    %s743 = scalar_lea.sflag [#allocation3], 1
    %744 = vsyncpa %s743, 1
    %745 = vsyncpa [#allocation5], 1

</llo_original>
